<compile_context>
chip_gen: v6e
topology: v6e:2x2x1
jax: 0.10.0
libtpu: 0.0.40
codegen_flags: <defaults>
</compile_context>

<pallas_src>
import functools
import math

import jax
import jax.numpy as jnp
from jax import lax
from jax.experimental import pallas as pl
from jax.experimental.pallas import tpu as pltpu

_VMEM_LIMIT = 32 * 1024 * 1024  # safe on v5e/v6e (128 MiB phys) and v7x (64 MiB phys)


# ----------------------------- quantization helpers -----------------------------

def _quant_params(x, bits):
    """f32 array [scale, qmin, qmax, 1/scale] matching quantize.scaling().

    Single fused abs-max reduction (one HBM pass) instead of separate max/min passes.
    """
    qmax = float(2 ** bits - 1)
    qmin = float(-(2 ** bits))
    amax = jnp.max(jnp.abs(x)).astype(jnp.float32)
    scale = 2.0 * amax / (qmax - qmin)
    scale = jnp.where(scale == 0.0, jnp.float32(1e-5), scale)
    inv_scale = 1.0 / scale
    return jnp.stack(
        [scale,
         jnp.asarray(qmin, jnp.float32),
         jnp.asarray(qmax, jnp.float32),
         inv_scale]
    )


# ----------------------------- fused quantize + linear -----------------------------

def quant_linear_kernel(qp_ref, x_ref, w_ref, b_ref, o_ref):
    """Fake-quantize(x) then x @ W + b for one (TM, N) output tile.

    W is bf16 and resident across the M grid (constant index_map); accumulation is f32.
    """
    scale = qp_ref[0]
    qmin = qp_ref[1]
    qmax = qp_ref[2]
    inv_scale = qp_ref[3]                       # hoisted reciprocal (host-side scalar)

    x = x_ref[...]                              # (TM, D) f32
    xq = jnp.clip(jnp.round(x * inv_scale), qmin, qmax) * scale
    o_ref[...] = (
        jnp.dot(xq.astype(jnp.bfloat16), w_ref[...],
                preferred_element_type=jnp.float32)
        + b_ref[...]
    )


def quant_linear(x2d, w_t_bf16, b, qparams, *, tm=512):
    """x2d: (M, D) f32, w_t_bf16: (D, N) bf16, b: (N,) f32, qparams: (4,) f32 (SMEM)."""
    M, D = x2d.shape
    N = w_t_bf16.shape[1]
    tm = min(tm, M)
    grid_m = pl.cdiv(M, tm)
    return pl.pallas_call(
        quant_linear_kernel,
        grid=(grid_m,),
        out_shape=jax.ShapeDtypeStruct((M, N), jnp.float32),
        in_specs=[
            pl.BlockSpec(memory_space=pltpu.MemorySpace.SMEM),    # quant scalars
            pl.BlockSpec((tm, D), lambda i: (i, 0)),              # activation M-tile
            pl.BlockSpec((D, N), lambda i: (0, 0)),               # weight (resident)
            pl.BlockSpec((1, N), lambda i: (0, 0)),               # bias   (resident)
        ],
        out_specs=pl.BlockSpec((tm, N), lambda i: (i, 0)),
        compiler_params=pltpu.CompilerParams(
            dimension_semantics=("parallel",),
            vmem_limit_bytes=_VMEM_LIMIT,
        ),
    )(qparams, x2d, w_t_bf16, b.reshape(1, N))


# ----------------------------- attention kernel -----------------------------

def attn_kernel(q_ref, k_ref, v_ref, o_ref, *, h, d_k, sm_scale):
    """One batch element, all heads packed: refs are (S, D) with D = h * d_k.

    Reads head slices from the lane-dense projection output, writes the merged-head
    context back lane-dense (D-wide store) -- no HBM transposes anywhere.
    """
    q = q_ref[...]
    k = k_ref[...]
    v = v_ref[...]
    for i in range(h):                           # unrolled at trace time (small h)
        sl = slice(i * d_k, (i + 1) * d_k)
        qh = q[:, sl].astype(jnp.bfloat16)       # (S, d_k)
        kh = k[:, sl].astype(jnp.bfloat16)
        vh = v[:, sl].astype(jnp.bfloat16)

        # scores = q_h @ k_h^T without an explicit transpose: contract the d_k axes.
        s = lax.dot_general(
            qh, kh,
            dimension_numbers=(((1,), (1,)), ((), ())),
            preferred_element_type=jnp.float32,
        ) * sm_scale                              # (S, S) f32

        m = jnp.max(s, axis=-1, keepdims=True)
        e = jnp.exp(s - m)
        denom = jnp.sum(e, axis=-1, keepdims=True)
        p = e * pl.reciprocal(denom, approx=True)  # EUP reciprocal, frees VPU divide

        ctx = jnp.dot(p.astype(jnp.bfloat16), vh,
                      preferred_element_type=jnp.float32)  # (S, d_k) f32
        o_ref[:, sl] = ctx


def attention(q, k, v, h):
    """q, k, v: (B, S, D) f32 (lane-dense) -> (B, S, D) f32 merged-head context."""
    B, S, D = q.shape
    d_k = D // h
    kern = functools.partial(attn_kernel, h=h, d_k=d_k, sm_scale=1.0 / math.sqrt(d_k))
    spec = pl.BlockSpec((None, S, D), lambda b: (b, 0, 0))   # leading dim squeezed
    return pl.pallas_call(
        kern,
        grid=(B,),
        out_shape=jax.ShapeDtypeStruct((B, S, D), jnp.float32),
        in_specs=[spec, spec, spec],
        out_specs=spec,
        compiler_params=pltpu.CompilerParams(
            dimension_semantics=("parallel",),
            vmem_limit_bytes=_VMEM_LIMIT,
        ),
    )(q, k, v)


# ----------------------------- full forward (jitted) -----------------------------

@functools.partial(jax.jit, static_argnames=("h", "bits"))
def mha_forward(query, key, value, wq, bq, wk, bk, wv, bv, wo, bo, *, h, bits):
    B, S, D = query.shape

    # per-tensor fake-quant params (tiny fused abs-max reductions)
    qp_q = _quant_params(query, bits)
    qp_k = _quant_params(key, bits)
    qp_v = _quant_params(value, bits)

    # fused fake-quantize + projection (tiled over rows, weights resident in VMEM)
    q = quant_linear(query.reshape(B * S, D), wq, bq, qp_q).reshape(B, S, D)
    k = quant_linear(key.reshape(B * S, D), wk, bk, qp_k).reshape(B, S, D)
    v = quant_linear(value.reshape(B * S, D), wv, bv, qp_v).reshape(B, S, D)

    # attention with in-kernel head split/merge; dropout is identity (inference).
    ctx = attention(q, k, v, h)                               # (B, S, D)

    # output fake-quantization scale over the whole attention output (elementwise
    # quantization commutes with head merge), fused into the output-linear kernel.
    qp_o = _quant_params(ctx, bits)
    out = quant_linear(ctx.reshape(B * S, D), wo, bo, qp_o)
    return out.reshape(B, S, D)


# ----------------------------- module wrapper -----------------------------

class MultiHeadedAttentionPallas:
    def __init__(self, h, d_model, dropout, bits, rng_key):
        assert d_model % h == 0
        self.h = h
        self.d_model = d_model
        self.d_k = d_model // h
        self.bits = bits
        self.dropout_p = dropout  # inference: identity

        bound = 1.0 / math.sqrt(d_model)  # nn.Linear default init range
        keys = jax.random.split(rng_key, 8)

        def lin(kw, kb):
            w = jax.random.uniform(kw, (d_model, d_model), jnp.float32, -bound, bound)
            b = jax.random.uniform(kb, (d_model,), jnp.float32, -bound, bound)
            # store pre-transposed (in, out) and in bf16: MXU-native, halves weight DMA.
            return w.T.astype(jnp.bfloat16), b

        self.wq_t, self.bq = lin(keys[0], keys[1])
        self.wk_t, self.bk = lin(keys[2], keys[3])
        self.wv_t, self.bv = lin(keys[4], keys[5])
        self.wo_t, self.bo = lin(keys[6], keys[7])

    def __call__(self, query, key, value, mask=None):
        assert mask is None  # TODO(synk): mask path (masked_fill) not implemented
        return mha_forward(
            query, key, value,
            self.wq_t, self.bq, self.wk_t, self.bk,
            self.wv_t, self.bv, self.wo_t, self.bo,
            h=self.h, bits=self.bits,
        )


# ----------------------------- demo -----------------------------

if __name__ == "__main__":
    B, S, D, H = 2, 8, 32, 4
    bits = 8

    root = jax.random.PRNGKey(0)
    kq, kk, kv, kw = jax.random.split(root, 4)
    query = jax.random.normal(kq, (B, S, D), jnp.float32)
    key = jax.random.normal(kk, (B, S, D), jnp.float32)
    value = jax.random.normal(kv, (B, S, D), jnp.float32)

    mha = MultiHeadedAttentionPallas(h=H, d_model=D, dropout=0.0, bits=bits, rng_key=kw)
    out = mha(query, key, value, mask=None)
    jax.block_until_ready(out)
    assert out.shape == (B, S, D) and out.dtype == jnp.float32
    print("KERNEL_OK")
</pallas_src>

<mosaic_0001>
module attributes {stable_mosaic.version = 11 : i64} {
  func.func @quant_linear_kernel(%arg0: i32, %arg1: memref<4xf32, #tpu.memory_space<smem>>, %arg2: memref<16x32xf32, #tpu.memory_space<vmem>>, %arg3: memref<32x32xbf16, #tpu.memory_space<vmem>>, %arg4: memref<1x32xf32, #tpu.memory_space<vmem>>, %arg5: memref<16x32xf32, #tpu.memory_space<vmem>>) attributes {dimension_semantics = [#tpu.dimension_semantics<parallel>], iteration_bounds = array<i64: 1>, scalar_prefetch = 0 : i64, scratch_operands = 0 : i64, tpu.core_type = #tpu.core_type<tc>, window_params = [{transform_indices = @transform_0, window_bounds = array<i64: 4>}, {transform_indices = @transform_1, window_bounds = array<i64: 16, 32>}, {pipeline_mode = #tpu.pipeline_mode<synchronous>, transform_indices = @transform_2, window_bounds = array<i64: 32, 32>}, {pipeline_mode = #tpu.pipeline_mode<synchronous>, transform_indices = @transform_3, window_bounds = array<i64: 1, 32>}, {transform_indices = @transform_4, window_bounds = array<i64: 16, 32>}]} {
    %c0 = arith.constant 0 : index
    %0 = memref.load %arg1[%c0] : memref<4xf32, #tpu.memory_space<smem>>
    %c1 = arith.constant 1 : index
    %1 = memref.load %arg1[%c1] : memref<4xf32, #tpu.memory_space<smem>>
    %c2 = arith.constant 2 : index
    %2 = memref.load %arg1[%c2] : memref<4xf32, #tpu.memory_space<smem>>
    %c3 = arith.constant 3 : index
    %3 = memref.load %arg1[%c3] : memref<4xf32, #tpu.memory_space<smem>>
    %c0_0 = arith.constant 0 : index
    %c0_1 = arith.constant 0 : index
    %4 = vector.load %arg2[%c0_0, %c0_1] : memref<16x32xf32, #tpu.memory_space<vmem>>, vector<16x32xf32>
    %5 = vector.broadcast %3 : f32 to vector<16x32xf32>
    %6 = arith.mulf %4, %5 : vector<16x32xf32>
    %7 = math.roundeven %6 : vector<16x32xf32>
    %8 = vector.broadcast %1 : f32 to vector<16x32xf32>
    %9 = arith.maximumf %8, %7 : vector<16x32xf32>
    %10 = vector.broadcast %2 : f32 to vector<16x32xf32>
    %11 = arith.minimumf %10, %9 : vector<16x32xf32>
    %12 = vector.broadcast %0 : f32 to vector<16x32xf32>
    %13 = arith.mulf %11, %12 : vector<16x32xf32>
    %14 = arith.truncf %13 : vector<16x32xf32> to vector<16x32xbf16>
    %c0_2 = arith.constant 0 : index
    %c0_3 = arith.constant 0 : index
    %15 = vector.load %arg3[%c0_2, %c0_3] : memref<32x32xbf16, #tpu.memory_space<vmem>>, vector<32x32xbf16>
    %cst = arith.constant dense<0.000000e+00> : vector<16x32xf32>
    %16 = tpu.matmul %14, %15, %cst {dimension_numbers = #tpu.dot_dimension_numbers<[1], [0], [0], [1], [0, 0, 1, 1], [], []>} : vector<16x32xbf16>, vector<32x32xbf16>, vector<16x32xf32> -> vector<16x32xf32>
    %c0_4 = arith.constant 0 : index
    %c0_5 = arith.constant 0 : index
    %17 = vector.load %arg4[%c0_4, %c0_5] : memref<1x32xf32, #tpu.memory_space<vmem>>, vector<1x32xf32>
    %18 = vector.broadcast %17 : vector<1x32xf32> to vector<16x32xf32>
    %19 = arith.addf %16, %18 : vector<16x32xf32>
    %c0_6 = arith.constant 0 : index
    %c0_7 = arith.constant 0 : index
    %20 = vector.load %arg5[%c0_6, %c0_7] : memref<16x32xf32, #tpu.memory_space<vmem>>, vector<16x32xf32>
    tpu.vector_store %arg5[%c0_6, %c0_7], %19 {strides = array<i32>} : memref<16x32xf32, #tpu.memory_space<vmem>>, vector<16x32xf32>,
    return
  }
  func.func @transform_0(%arg0: i32) -> i32 {
    %c0_i32 = arith.constant 0 : i32
    %c0_i32_0 = arith.constant 0 : i32
    return %c0_i32 : i32
  }
  func.func @transform_1(%arg0: i32) -> (i32, i32) {
    %c0_i32 = arith.constant 0 : i32
    %c0_i32_0 = arith.constant 0 : i32
    return %arg0, %c0_i32 : i32, i32
  }
  func.func @transform_2(%arg0: i32) -> (i32, i32) {
    %c0_i32 = arith.constant 0 : i32
    %c0_i32_0 = arith.constant 0 : i32
    %c0_i32_1 = arith.constant 0 : i32
    return %c0_i32, %c0_i32_0 : i32, i32
  }
  func.func @transform_3(%arg0: i32) -> (i32, i32) {
    %c0_i32 = arith.constant 0 : i32
    %c0_i32_0 = arith.constant 0 : i32
    %c0_i32_1 = arith.constant 0 : i32
    return %c0_i32, %c0_i32_0 : i32, i32
  }
  func.func @transform_4(%arg0: i32) -> (i32, i32) {
    %c0_i32 = arith.constant 0 : i32
    %c0_i32_0 = arith.constant 0 : i32
    return %arg0, %c0_i32 : i32, i32
  }
}

module attributes {stable_mosaic.version = 11 : i64} {
  func.func @quant_linear_kernel(%arg0: i32, %arg1: memref<4xf32, #tpu.memory_space<smem>>, %arg2: memref<16x32xf32, #tpu.memory_space<vmem>>, %arg3: memref<32x32xbf16, #tpu.memory_space<vmem>>, %arg4: memref<1x32xf32, #tpu.memory_space<vmem>>, %arg5: memref<16x32xf32, #tpu.memory_space<vmem>>) attributes {dimension_semantics = [#tpu.dimension_semantics<parallel>], iteration_bounds = array<i64: 1>, scalar_prefetch = 0 : i64, scratch_operands = 0 : i64, tpu.core_type = #tpu.core_type<tc>, window_params = [{transform_indices = @transform_0, window_bounds = array<i64: 4>}, {transform_indices = @transform_1, window_bounds = array<i64: 16, 32>}, {pipeline_mode = #tpu.pipeline_mode<synchronous>, transform_indices = @transform_2, window_bounds = array<i64: 32, 32>}, {pipeline_mode = #tpu.pipeline_mode<synchronous>, transform_indices = @transform_3, window_bounds = array<i64: 1, 32>}, {transform_indices = @transform_4, window_bounds = array<i64: 16, 32>}]} {
    %c0 = arith.constant 0 : index
    %0 = memref.load %arg1[%c0] : memref<4xf32, #tpu.memory_space<smem>>
    %c1 = arith.constant 1 : index
    %1 = memref.load %arg1[%c1] : memref<4xf32, #tpu.memory_space<smem>>
    %c2 = arith.constant 2 : index
    %2 = memref.load %arg1[%c2] : memref<4xf32, #tpu.memory_space<smem>>
    %c3 = arith.constant 3 : index
    %3 = memref.load %arg1[%c3] : memref<4xf32, #tpu.memory_space<smem>>
    %c0_0 = arith.constant 0 : index
    %c0_1 = arith.constant 0 : index
    %4 = vector.load %arg2[%c0_0, %c0_1] : memref<16x32xf32, #tpu.memory_space<vmem>>, vector<16x32xf32>
    %5 = vector.broadcast %3 : f32 to vector<16x32xf32>
    %6 = arith.mulf %4, %5 : vector<16x32xf32>
    %7 = math.roundeven %6 : vector<16x32xf32>
    %8 = vector.broadcast %1 : f32 to vector<16x32xf32>
    %9 = arith.maximumf %8, %7 : vector<16x32xf32>
    %10 = vector.broadcast %2 : f32 to vector<16x32xf32>
    %11 = arith.minimumf %10, %9 : vector<16x32xf32>
    %12 = vector.broadcast %0 : f32 to vector<16x32xf32>
    %13 = arith.mulf %11, %12 : vector<16x32xf32>
    %14 = arith.truncf %13 : vector<16x32xf32> to vector<16x32xbf16>
    %c0_2 = arith.constant 0 : index
    %c0_3 = arith.constant 0 : index
    %15 = vector.load %arg3[%c0_2, %c0_3] : memref<32x32xbf16, #tpu.memory_space<vmem>>, vector<32x32xbf16>
    %cst = arith.constant dense<0.000000e+00> : vector<16x32xf32>
    %16 = tpu.matmul %14, %15, %cst {dimension_numbers = #tpu.dot_dimension_numbers<[1], [0], [0], [1], [0, 0, 1, 1], [], []>} : vector<16x32xbf16>, vector<32x32xbf16>, vector<16x32xf32> -> vector<16x32xf32>
    %c0_4 = arith.constant 0 : index
    %c0_5 = arith.constant 0 : index
    %17 = vector.load %arg4[%c0_4, %c0_5] : memref<1x32xf32, #tpu.memory_space<vmem>>, vector<1x32xf32>
    %18 = vector.broadcast %17 : vector<1x32xf32> to vector<16x32xf32>
    %19 = arith.addf %16, %18 : vector<16x32xf32>
    %c0_6 = arith.constant 0 : index
    %c0_7 = arith.constant 0 : index
    %20 = vector.load %arg5[%c0_6, %c0_7] : memref<16x32xf32, #tpu.memory_space<vmem>>, vector<16x32xf32>
    tpu.vector_store %arg5[%c0_6, %c0_7], %19 {strides = array<i32>} : memref<16x32xf32, #tpu.memory_space<vmem>>, vector<16x32xf32>,
    return
  }
  func.func @transform_0(%arg0: i32) -> i32 {
    %c0_i32 = arith.constant 0 : i32
    %c0_i32_0 = arith.constant 0 : i32
    return %c0_i32 : i32
  }
  func.func @transform_1(%arg0: i32) -> (i32, i32) {
    %c0_i32 = arith.constant 0 : i32
    %c0_i32_0 = arith.constant 0 : i32
    return %arg0, %c0_i32 : i32, i32
  }
  func.func @transform_2(%arg0: i32) -> (i32, i32) {
    %c0_i32 = arith.constant 0 : i32
    %c0_i32_0 = arith.constant 0 : i32
    %c0_i32_1 = arith.constant 0 : i32
    return %c0_i32, %c0_i32_0 : i32, i32
  }
  func.func @transform_3(%arg0: i32) -> (i32, i32) {
    %c0_i32 = arith.constant 0 : i32
    %c0_i32_0 = arith.constant 0 : i32
    %c0_i32_1 = arith.constant 0 : i32
    return %c0_i32, %c0_i32_0 : i32, i32
  }
  func.func @transform_4(%arg0: i32) -> (i32, i32) {
    %c0_i32 = arith.constant 0 : i32
    %c0_i32_0 = arith.constant 0 : i32
    return %arg0, %c0_i32 : i32, i32
  }
}

module attributes {stable_mosaic.version = 11 : i64} {
  func.func @attn_kernel(%arg0: i32, %arg1: memref<1x8x32xf32, #tpu.memory_space<vmem>>, %arg2: memref<1x8x32xf32, #tpu.memory_space<vmem>>, %arg3: memref<1x8x32xf32, #tpu.memory_space<vmem>>, %arg4: memref<1x8x32xf32, #tpu.memory_space<vmem>>) attributes {dimension_semantics = [#tpu.dimension_semantics<parallel>], iteration_bounds = array<i64: 2>, scalar_prefetch = 0 : i64, scratch_operands = 0 : i64, tpu.core_type = #tpu.core_type<tc>, window_params = [{transform_indices = @transform_0, window_bounds = array<i64: 1, 8, 32>}, {transform_indices = @transform_1, window_bounds = array<i64: 1, 8, 32>}, {transform_indices = @transform_2, window_bounds = array<i64: 1, 8, 32>}, {transform_indices = @transform_3, window_bounds = array<i64: 1, 8, 32>}]} {
    %c0 = arith.constant 0 : index
    %c0_0 = arith.constant 0 : index
    %c0_1 = arith.constant 0 : index
    %0 = vector.load %arg1[%c0, %c0_0, %c0_1] : memref<1x8x32xf32, #tpu.memory_space<vmem>>, vector<1x8x32xf32>
    %1 = vector.shape_cast %0 : vector<1x8x32xf32> to vector<8x32xf32>
    %c0_2 = arith.constant 0 : index
    %c0_3 = arith.constant 0 : index
    %c0_4 = arith.constant 0 : index
    %2 = vector.load %arg2[%c0_2, %c0_3, %c0_4] : memref<1x8x32xf32, #tpu.memory_space<vmem>>, vector<1x8x32xf32>
    %3 = vector.shape_cast %2 : vector<1x8x32xf32> to vector<8x32xf32>
    %c0_5 = arith.constant 0 : index
    %c0_6 = arith.constant 0 : index
    %c0_7 = arith.constant 0 : index
    %4 = vector.load %arg3[%c0_5, %c0_6, %c0_7] : memref<1x8x32xf32, #tpu.memory_space<vmem>>, vector<1x8x32xf32>
    %5 = vector.shape_cast %4 : vector<1x8x32xf32> to vector<8x32xf32>
    %6 = vector.extract_strided_slice %1 {offsets = [0, 0], sizes = [8, 8], strides = [1, 1]} : vector<8x32xf32> to vector<8x8xf32>
    %7 = arith.truncf %6 : vector<8x8xf32> to vector<8x8xbf16>
    %8 = vector.extract_strided_slice %3 {offsets = [0, 0], sizes = [8, 8], strides = [1, 1]} : vector<8x32xf32> to vector<8x8xf32>
    %9 = arith.truncf %8 : vector<8x8xf32> to vector<8x8xbf16>
    %10 = vector.extract_strided_slice %5 {offsets = [0, 0], sizes = [8, 8], strides = [1, 1]} : vector<8x32xf32> to vector<8x8xf32>
    %11 = arith.truncf %10 : vector<8x8xf32> to vector<8x8xbf16>
    %cst = arith.constant dense<0.000000e+00> : vector<8x8xf32>
    %12 = tpu.matmul %7, %9, %cst {dimension_numbers = #tpu.dot_dimension_numbers<[1], [1], [0], [0], [0, 0, 1, 0], [], []>} : vector<8x8xbf16>, vector<8x8xbf16>, vector<8x8xf32> -> vector<8x8xf32>
    %cst_8 = arith.constant 0.353553385 : f32
    %13 = vector.broadcast %cst_8 : f32 to vector<8x8xf32>
    %14 = arith.mulf %12, %13 : vector<8x8xf32>
    %cst_9 = arith.constant dense<0xFF800000> : vector<8xf32>
    %15 = vector.multi_reduction <maximumf>, %14, %cst_9 [1] : vector<8x8xf32> to vector<8xf32>
    %16 = vector.shape_cast %15 : vector<8xf32> to vector<8x1xf32>
    %17 = vector.broadcast %16 : vector<8x1xf32> to vector<8x8xf32>
    %18 = arith.subf %14, %17 : vector<8x8xf32>
    %19 = math.exp %18 : vector<8x8xf32>
    %cst_10 = arith.constant dense<0.000000e+00> : vector<8xf32>
    %20 = vector.multi_reduction <add>, %19, %cst_10 [1] : vector<8x8xf32> to vector<8xf32>
    %21 = vector.shape_cast %20 : vector<8xf32> to vector<8x1xf32>
    %22 = tpu.reciprocal %21 {approx = true} : vector<8x1xf32> -> vector<8x1xf32>
    %23 = vector.broadcast %22 : vector<8x1xf32> to vector<8x8xf32>
    %24 = arith.mulf %19, %23 : vector<8x8xf32>
    %25 = arith.truncf %24 : vector<8x8xf32> to vector<8x8xbf16>
    %cst_11 = arith.constant dense<0.000000e+00> : vector<8x8xf32>
    %26 = tpu.matmul %25, %11, %cst_11 {dimension_numbers = #tpu.dot_dimension_numbers<[1], [0], [0], [1], [0, 0, 1, 1], [], []>} : vector<8x8xbf16>, vector<8x8xbf16>, vector<8x8xf32> -> vector<8x8xf32>
    %c0_12 = arith.constant 0 : index
    %c0_13 = arith.constant 0 : index
    %c0_14 = arith.constant 0 : index
    %27 = vector.load %arg4[%c0_12, %c0_13, %c0_14] : memref<1x8x32xf32, #tpu.memory_space<vmem>>, vector<1x8x8xf32>
    %28 = vector.shape_cast %27 : vector<1x8x8xf32> to vector<8x8xf32>
    %29 = vector.shape_cast %26 : vector<8x8xf32> to vector<1x8x8xf32>
    tpu.vector_store %arg4[%c0_12, %c0_13, %c0_14], %29 {strides = array<i32>} : memref<1x8x32xf32, #tpu.memory_space<vmem>>, vector<1x8x8xf32>,
    %30 = vector.extract_strided_slice %1 {offsets = [0, 8], sizes = [8, 8], strides = [1, 1]} : vector<8x32xf32> to vector<8x8xf32>
    %31 = arith.truncf %30 : vector<8x8xf32> to vector<8x8xbf16>
    %32 = vector.extract_strided_slice %3 {offsets = [0, 8], sizes = [8, 8], strides = [1, 1]} : vector<8x32xf32> to vector<8x8xf32>
    %33 = arith.truncf %32 : vector<8x8xf32> to vector<8x8xbf16>
    %34 = vector.extract_strided_slice %5 {offsets = [0, 8], sizes = [8, 8], strides = [1, 1]} : vector<8x32xf32> to vector<8x8xf32>
    %35 = arith.truncf %34 : vector<8x8xf32> to vector<8x8xbf16>
    %cst_15 = arith.constant dense<0.000000e+00> : vector<8x8xf32>
    %36 = tpu.matmul %31, %33, %cst_15 {dimension_numbers = #tpu.dot_dimension_numbers<[1], [1], [0], [0], [0, 0, 1, 0], [], []>} : vector<8x8xbf16>, vector<8x8xbf16>, vector<8x8xf32> -> vector<8x8xf32>
    %cst_16 = arith.constant 0.353553385 : f32
    %37 = vector.broadcast %cst_16 : f32 to vector<8x8xf32>
    %38 = arith.mulf %36, %37 : vector<8x8xf32>
    %cst_17 = arith.constant dense<0xFF800000> : vector<8xf32>
    %39 = vector.multi_reduction <maximumf>, %38, %cst_17 [1] : vector<8x8xf32> to vector<8xf32>
    %40 = vector.shape_cast %39 : vector<8xf32> to vector<8x1xf32>
    %41 = vector.broadcast %40 : vector<8x1xf32> to vector<8x8xf32>
    %42 = arith.subf %38, %41 : vector<8x8xf32>
    %43 = math.exp %42 : vector<8x8xf32>
    %cst_18 = arith.constant dense<0.000000e+00> : vector<8xf32>
    %44 = vector.multi_reduction <add>, %43, %cst_18 [1] : vector<8x8xf32> to vector<8xf32>
    %45 = vector.shape_cast %44 : vector<8xf32> to vector<8x1xf32>
    %46 = tpu.reciprocal %45 {approx = true} : vector<8x1xf32> -> vector<8x1xf32>
    %47 = vector.broadcast %46 : vector<8x1xf32> to vector<8x8xf32>
    %48 = arith.mulf %43, %47 : vector<8x8xf32>
    %49 = arith.truncf %48 : vector<8x8xf32> to vector<8x8xbf16>
    %cst_19 = arith.constant dense<0.000000e+00> : vector<8x8xf32>
    %50 = tpu.matmul %49, %35, %cst_19 {dimension_numbers = #tpu.dot_dimension_numbers<[1], [0], [0], [1], [0, 0, 1, 1], [], []>} : vector<8x8xbf16>, vector<8x8xbf16>, vector<8x8xf32> -> vector<8x8xf32>
    %c0_20 = arith.constant 0 : index
    %c0_21 = arith.constant 0 : index
    %c8 = arith.constant 8 : index
    %51 = vector.load %arg4[%c0_20, %c0_21, %c8] : memref<1x8x32xf32, #tpu.memory_space<vmem>>, vector<1x8x8xf32>
    %52 = vector.shape_cast %51 : vector<1x8x8xf32> to vector<8x8xf32>
    %53 = vector.shape_cast %50 : vector<8x8xf32> to vector<1x8x8xf32>
    tpu.vector_store %arg4[%c0_20, %c0_21, %c8], %53 {strides = array<i32>} : memref<1x8x32xf32, #tpu.memory_space<vmem>>, vector<1x8x8xf32>,
    %54 = vector.extract_strided_slice %1 {offsets = [0, 16], sizes = [8, 8], strides = [1, 1]} : vector<8x32xf32> to vector<8x8xf32>
    %55 = arith.truncf %54 : vector<8x8xf32> to vector<8x8xbf16>
    %56 = vector.extract_strided_slice %3 {offsets = [0, 16], sizes = [8, 8], strides = [1, 1]} : vector<8x32xf32> to vector<8x8xf32>
    %57 = arith.truncf %56 : vector<8x8xf32> to vector<8x8xbf16>
    %58 = vector.extract_strided_slice %5 {offsets = [0, 16], sizes = [8, 8], strides = [1, 1]} : vector<8x32xf32> to vector<8x8xf32>
    %59 = arith.truncf %58 : vector<8x8xf32> to vector<8x8xbf16>
    %cst_22 = arith.constant dense<0.000000e+00> : vector<8x8xf32>
    %60 = tpu.matmul %55, %57, %cst_22 {dimension_numbers = #tpu.dot_dimension_numbers<[1], [1], [0], [0], [0, 0, 1, 0], [], []>} : vector<8x8xbf16>, vector<8x8xbf16>, vector<8x8xf32> -> vector<8x8xf32>
    %cst_23 = arith.constant 0.353553385 : f32
    %61 = vector.broadcast %cst_23 : f32 to vector<8x8xf32>
    %62 = arith.mulf %60, %61 : vector<8x8xf32>
    %cst_24 = arith.constant dense<0xFF800000> : vector<8xf32>
    %63 = vector.multi_reduction <maximumf>, %62, %cst_24 [1] : vector<8x8xf32> to vector<8xf32>
    %64 = vector.shape_cast %63 : vector<8xf32> to vector<8x1xf32>
    %65 = vector.broadcast %64 : vector<8x1xf32> to vector<8x8xf32>
    %66 = arith.subf %62, %65 : vector<8x8xf32>
    %67 = math.exp %66 : vector<8x8xf32>
    %cst_25 = arith.constant dense<0.000000e+00> : vector<8xf32>
    %68 = vector.multi_reduction <add>, %67, %cst_25 [1] : vector<8x8xf32> to vector<8xf32>
    %69 = vector.shape_cast %68 : vector<8xf32> to vector<8x1xf32>
    %70 = tpu.reciprocal %69 {approx = true} : vector<8x1xf32> -> vector<8x1xf32>
    %71 = vector.broadcast %70 : vector<8x1xf32> to vector<8x8xf32>
    %72 = arith.mulf %67, %71 : vector<8x8xf32>
    %73 = arith.truncf %72 : vector<8x8xf32> to vector<8x8xbf16>
    %cst_26 = arith.constant dense<0.000000e+00> : vector<8x8xf32>
    %74 = tpu.matmul %73, %59, %cst_26 {dimension_numbers = #tpu.dot_dimension_numbers<[1], [0], [0], [1], [0, 0, 1, 1], [], []>} : vector<8x8xbf16>, vector<8x8xbf16>, vector<8x8xf32> -> vector<8x8xf32>
    %c0_27 = arith.constant 0 : index
    %c0_28 = arith.constant 0 : index
    %c16 = arith.constant 16 : index
    %75 = vector.load %arg4[%c0_27, %c0_28, %c16] : memref<1x8x32xf32, #tpu.memory_space<vmem>>, vector<1x8x8xf32>
    %76 = vector.shape_cast %75 : vector<1x8x8xf32> to vector<8x8xf32>
    %77 = vector.shape_cast %74 : vector<8x8xf32> to vector<1x8x8xf32>
    tpu.vector_store %arg4[%c0_27, %c0_28, %c16], %77 {strides = array<i32>} : memref<1x8x32xf32, #tpu.memory_space<vmem>>, vector<1x8x8xf32>,
    %78 = vector.extract_strided_slice %1 {offsets = [0, 24], sizes = [8, 8], strides = [1, 1]} : vector<8x32xf32> to vector<8x8xf32>
    %79 = arith.truncf %78 : vector<8x8xf32> to vector<8x8xbf16>
    %80 = vector.extract_strided_slice %3 {offsets = [0, 24], sizes = [8, 8], strides = [1, 1]} : vector<8x32xf32> to vector<8x8xf32>
    %81 = arith.truncf %80 : vector<8x8xf32> to vector<8x8xbf16>
    %82 = vector.extract_strided_slice %5 {offsets = [0, 24], sizes = [8, 8], strides = [1, 1]} : vector<8x32xf32> to vector<8x8xf32>
    %83 = arith.truncf %82 : vector<8x8xf32> to vector<8x8xbf16>
    %cst_29 = arith.constant dense<0.000000e+00> : vector<8x8xf32>
    %84 = tpu.matmul %79, %81, %cst_29 {dimension_numbers = #tpu.dot_dimension_numbers<[1], [1], [0], [0], [0, 0, 1, 0], [], []>} : vector<8x8xbf16>, vector<8x8xbf16>, vector<8x8xf32> -> vector<8x8xf32>
    %cst_30 = arith.constant 0.353553385 : f32
    %85 = vector.broadcast %cst_30 : f32 to vector<8x8xf32>
    %86 = arith.mulf %84, %85 : vector<8x8xf32>
    %cst_31 = arith.constant dense<0xFF800000> : vector<8xf32>
    %87 = vector.multi_reduction <maximumf>, %86, %cst_31 [1] : vector<8x8xf32> to vector<8xf32>
    %88 = vector.shape_cast %87 : vector<8xf32> to vector<8x1xf32>
    %89 = vector.broadcast %88 : vector<8x1xf32> to vector<8x8xf32>
    %90 = arith.subf %86, %89 : vector<8x8xf32>
    %91 = math.exp %90 : vector<8x8xf32>
    %cst_32 = arith.constant dense<0.000000e+00> : vector<8xf32>
    %92 = vector.multi_reduction <add>, %91, %cst_32 [1] : vector<8x8xf32> to vector<8xf32>
    %93 = vector.shape_cast %92 : vector<8xf32> to vector<8x1xf32>
    %94 = tpu.reciprocal %93 {approx = true} : vector<8x1xf32> -> vector<8x1xf32>
    %95 = vector.broadcast %94 : vector<8x1xf32> to vector<8x8xf32>
    %96 = arith.mulf %91, %95 : vector<8x8xf32>
    %97 = arith.truncf %96 : vector<8x8xf32> to vector<8x8xbf16>
    %cst_33 = arith.constant dense<0.000000e+00> : vector<8x8xf32>
    %98 = tpu.matmul %97, %83, %cst_33 {dimension_numbers = #tpu.dot_dimension_numbers<[1], [0], [0], [1], [0, 0, 1, 1], [], []>} : vector<8x8xbf16>, vector<8x8xbf16>, vector<8x8xf32> -> vector<8x8xf32>
    %c0_34 = arith.constant 0 : index
    %c0_35 = arith.constant 0 : index
    %c24 = arith.constant 24 : index
    %99 = vector.load %arg4[%c0_34, %c0_35, %c24] : memref<1x8x32xf32, #tpu.memory_space<vmem>>, vector<1x8x8xf32>
    %100 = vector.shape_cast %99 : vector<1x8x8xf32> to vector<8x8xf32>
    %101 = vector.shape_cast %98 : vector<8x8xf32> to vector<1x8x8xf32>
    tpu.vector_store %arg4[%c0_34, %c0_35, %c24], %101 {strides = array<i32>} : memref<1x8x32xf32, #tpu.memory_space<vmem>>, vector<1x8x8xf32>,
    return
  }
  func.func @transform_0(%arg0: i32) -> (i32, i32, i32) {
    %c0_i32 = arith.constant 0 : i32
    %c0_i32_0 = arith.constant 0 : i32
    %c0_i32_1 = arith.constant 0 : i32
    return %arg0, %c0_i32, %c0_i32_0 : i32, i32, i32
  }
  func.func @transform_1(%arg0: i32) -> (i32, i32, i32) {
    %c0_i32 = arith.constant 0 : i32
    %c0_i32_0 = arith.constant 0 : i32
    %c0_i32_1 = arith.constant 0 : i32
    return %arg0, %c0_i32, %c0_i32_0 : i32, i32, i32
  }
  func.func @transform_2(%arg0: i32) -> (i32, i32, i32) {
    %c0_i32 = arith.constant 0 : i32
    %c0_i32_0 = arith.constant 0 : i32
    %c0_i32_1 = arith.constant 0 : i32
    return %arg0, %c0_i32, %c0_i32_0 : i32, i32, i32
  }
  func.func @transform_3(%arg0: i32) -> (i32, i32, i32) {
    %c0_i32 = arith.constant 0 : i32
    %c0_i32_0 = arith.constant 0 : i32
    %c0_i32_1 = arith.constant 0 : i32
    return %arg0, %c0_i32, %c0_i32_0 : i32, i32, i32
  }
}

</mosaic_0001>

<llo_original>
// kernel: mha_forward.5
$region0: #{mha_forward.5}
  #allocation0 [shape = 'u32[]', space=smem, size = 0x4, offset = 0x4, fixed_abs, tag = 'smem constant byte address 0x4 - core index']
  #allocation1 [shape = 'u32[144,128]{1,0:T(1,128)}', space=vmem, size = 0x12000, scoped, tag = 'internal scratch']
  %s0 = inlined_call_operand.vmem [shape: f32[4], index: 0, kind: input, shape index: {}]
  %s1 = inlined_call_operand.vmem [shape: f32[16,32], index: 1, kind: input, shape index: {}]
  %s2 = inlined_call_operand.vmem [shape: bf16[32,32], index: 2, kind: input, shape index: {}]
  %s3 = inlined_call_operand.vmem [shape: f32[1,32], index: 3, kind: input, shape index: {}]
  %s4 = inlined_call_operand.vmem [shape: f32[16,32], index: 4, kind: output, shape index: {}]
  %s5 = sld [smem:[#allocation0]]
  $region30: #{mha_forward.5} parent=0
    _
  %s7 = ssub.s32 1, %s5
  %s8 = scalar_select 0, %s7, %s5
  $region1: #{mha_forward.5} parent=0
    #allocation2 [shape = 'u8[512]{0}', space=smem, size = 0x200, scoped, tag = 'input window, operand 0, single buffered']
    #allocation3 [shape = 's32[1]{0}', space=sflag, size = 0x4, scoped, tag = 'scoped memory for mha_forward.5']
    %9 = vsyncpa [#allocation3], 0
    // Predicated region
    $region2: #{mha_forward.5} parent=1 // pred_check
      _
    $region3: #{mha_forward.5} parent=1 // pred_check_branch
      %11 = sbr.rel (0) target = $region5
    $region4: #{mha_forward.5} parent=1 // pred_region
      %s13 = ssub.s32 16, 16
      %14 = vsyncadd [#allocation3], %s13
      %s16 = sshll.u32 %s0, 4
      %s17 = int_to_ptr.vmem [resolvable:$true] %s16
      %19 = dma.vmem_to_smem %s17, 16, [#allocation2], [#allocation3]
    $region5: #{mha_forward.5} parent=1 // pred_fallthru
      _
    // Predicated region
    $region6: #{mha_forward.5} parent=1 // pred_check
      _
    $region7: #{mha_forward.5} parent=1 // pred_check_branch
      %21 = sbr.rel (0) target = $region9
    $region8: #{mha_forward.5} parent=1 // pred_region
      _
    $region9: #{mha_forward.5} parent=1 // pred_fallthru
      _
    // Predicated region
    $region10: #{mha_forward.5} parent=1 // pred_check
      _
    $region11: #{mha_forward.5} parent=1 // pred_check_branch
      %23 = sbr.rel (0) target = $region13
    $region12: #{mha_forward.5} parent=1 // pred_region
      _
    $region13: #{mha_forward.5} parent=1 // pred_fallthru
      _
    // Predicated region
    $region14: #{mha_forward.5} parent=1 // pred_check
      _
    $region15: #{mha_forward.5} parent=1 // pred_check_branch
      %25 = sbr.rel (0) target = $region17
    $region16: #{mha_forward.5} parent=1 // pred_region
      _
    $region17: #{mha_forward.5} parent=1 // pred_fallthru
      _
    // Predicated region
    $region18: #{mha_forward.5} parent=1 // pred_check
      _
    $region19: #{mha_forward.5} parent=1 // pred_check_branch
      %27 = sbr.rel (0) target = $region21
    $region20: #{mha_forward.5} parent=1 // pred_region
      %28 = dma.done [#allocation3], 16
    $region21: #{mha_forward.5} parent=1 // pred_fallthru
      _
    %29 = sfence
    %s31 = sld [smem:[#allocation2]]
    %s32 = sld [smem:[#allocation2 + $0x1]]
    %s33 = sld [smem:[#allocation2 + $0x2]]
    %s34 = sld [smem:[#allocation2 + $0x3]]
    %v35 = vld [vmem:[%s1] sm:$0xff]
    %v36 = vld [vmem:[%s1 + $0x8] sm:$0xff]
    %v37 = vstv %s34
    %v38 = vmul.f32 %v35, %v37
    %v39 = vmul.f32 %v36, %v37
    %v40 = vround.ne.pseudo %v38
    %v41 = vround.ne.pseudo %v39
    %v42 = vstv %s32
    %v43 = vmax.f32 %v42, %v40
    %v44 = vmax.f32 %v42, %v41
    %v45 = vstv %s33
    %v46 = vmin.f32 %v45, %v43
    %v47 = vmin.f32 %v45, %v44
    %v48 = vstv %s31
    %v49 = vmul.f32 %v46, %v48
    %v50 = vmul.f32 %v47, %v48
    %v51 = vpack.c.bf16 %v50, %v49
    %v52 = vld [vmem:[%s2] sm:$0xf]
    %v53 = vld [vmem:[%s2 + $0x4] sm:$0xf]
    %v54 = vld [vmem:[%s2 + $0x8] sm:$0xf]
    %v55 = vld [vmem:[%s2 + $0xc] sm:$0xf]
    %v56 = vld [vmem:[%s3] sm:$0x1]
    %v58 = vlaneseq
    %v59 = vshrl.u32 %v58, 7
    %v60 = vsub.s32 0, %v59
    %v61 = vrot.slane %v56, %v60
    %v67 = vunpack.c.l.b16 %v52
    %v68 = vunpack.c.l.b16 %v53
    %v69 = vunpack.c.l.b16 %v54
    %v70 = vunpack.c.l.b16 %v55
    %v71 = vpack.c.b16 %v68, %v67
    %v72 = vpack.c.b16 %v70, %v69
    %vm75 = vcmask 261120
    %v77 = vsel %vm75, %v51, 0
    %79 = vmatprep.subr.bf16.mxu0 0
    %80 = vmatpush1.bf16.msra.mxu0 0
    %81 = vmatprep.subr.bf16.mxu0 0
    %82 = vmatpush1.bf16.msra.mxu0 0
    %83 = vmatprep.subr.bf16.mxu0 0
    %84 = vmatpush1.bf16.msra.mxu0 0
    %85 = vmatprep.subr.bf16.mxu0 0
    %86 = vmatpush1.bf16.msra.mxu0 0
    %87 = vmatprep.subr.bf16.mxu0 0
    %88 = vmatpush1.bf16.msra.mxu0 0
    %89 = vmatprep.subr.bf16.mxu0 0
    %90 = vmatpush1.bf16.msra.mxu0 0
    %91 = vmatprep.subr.bf16.mxu0 0
    %92 = vmatpush1.bf16.msra.mxu0 %v72
    %93 = vmatprep.subr.bf16.mxu0 0
    %94 = vmatpush1.bf16.msra.mxu0 %v71
    %95 = vmatprep.subr.bf16.mxu0 0
    %96 = vmatpush2.bf16.msra.mxu0 0
    %97 = vmatprep.subr.bf16.mxu0 0
    %98 = vmatpush2.bf16.msra.mxu0 0
    %99 = vmatprep.subr.bf16.mxu0 0
    %100 = vmatpush2.bf16.msra.mxu0 0
    %101 = vmatprep.subr.bf16.mxu0 0
    %102 = vmatpush2.bf16.msra.mxu0 0
    %103 = vmatprep.subr.bf16.mxu0 0
    %104 = vmatpush2.bf16.msra.mxu0 0
    %105 = vmatprep.subr.bf16.mxu0 0
    %106 = vmatpush2.bf16.msra.mxu0 0
    %107 = vmatprep.subr.bf16.mxu0 0
    %108 = vmatpush2.bf16.msra.mxu0 0
    %109 = vmatprep.subr.bf16.mxu0 0
    %110 = vmatpush2.bf16.msra.mxu0 0
    %111 = vmatprep.mubr.bf16.mxu0 0
    %112 = vmatmul.mubr.bf16.gmra.mxu0 %v77
    %v113 = vpop.f32.mrf.mxu0
    %v114 = vadd.f32 %v61, %v113
    %v115 = vpop.f32.mrf.mxu0
    %v116 = vpop.f32.mrf.mxu0
    %v117 = vadd.f32 %v61, %v116
    %v118 = vpop.f32.mrf.mxu0
    %119 = vdwg.mxu0
    %120 = vst.msk [vmem:[%s4] sm:$0xff] %vm75, %v114
    %121 = vst.msk [vmem:[%s4 + $0x8] sm:$0xff] %vm75, %v117
    // Predicated region
    $region22: #{mha_forward.5} parent=1 // pred_check
      _
    $region23: #{mha_forward.5} parent=1 // pred_check_branch
      %123 = sbr.rel (0) target = $region25
    $region24: #{mha_forward.5} parent=1 // pred_region
      _
    $region25: #{mha_forward.5} parent=1 // pred_fallthru
      _
    // Predicated region
    $region26: #{mha_forward.5} parent=1 // pred_check
      _
    $region27: #{mha_forward.5} parent=1 // pred_check_branch
      %125 = sbr.rel (0) target = $region29
    $region28: #{mha_forward.5} parent=1 // pred_region
      _
    $region29: #{mha_forward.5} parent=1 // pred_fallthru
      _
    %126 = vsyncpa [#allocation3], 1

// kernel: mha_forward.9
$region0: #{mha_forward.9}
  #allocation0 [shape = 'u32[]', space=smem, size = 0x4, offset = 0x4, fixed_abs, tag = 'smem constant byte address 0x4 - core index']
  #allocation1 [shape = 'u32[144,128]{1,0:T(1,128)}', space=vmem, size = 0x12000, scoped, tag = 'internal scratch']
  %s0 = inlined_call_operand.vmem [shape: f32[4], index: 0, kind: input, shape index: {}]
  %s1 = inlined_call_operand.vmem [shape: f32[16,32], index: 1, kind: input, shape index: {}]
  %s2 = inlined_call_operand.vmem [shape: bf16[32,32], index: 2, kind: input, shape index: {}]
  %s3 = inlined_call_operand.vmem [shape: f32[1,32], index: 3, kind: input, shape index: {}]
  %s4 = inlined_call_operand.hbm [shape: f32[16,32], index: 4, kind: output, shape index: {}]
  %s5 = sld [smem:[#allocation0]]
  $region30: #{mha_forward.9} parent=0
    _
  %s7 = ssub.s32 1, %s5
  %s8 = scalar_select 0, %s7, %s5
  $region1: #{mha_forward.9} parent=0
    #allocation2 [shape = 'u8[512]{0}', space=smem, size = 0x200, scoped, tag = 'input window, operand 0, single buffered']
    #allocation3 [shape = 's32[1]{0}', space=sflag, size = 0x4, scoped, tag = 'scoped memory for mha_forward.9']
    #allocation4 [shape = 's32[1]{0}', space=sflag, size = 0x4, scoped, tag = 'scoped memory for mha_forward.9']
    #allocation5 [shape = 'u8[8192]{0}', space=vmem, size = 0x2000, scoped, tag = 'output window, operand 0, single buffered']
    %9 = vsyncpa [#allocation4], 0
    %10 = vsyncpa [#allocation3], 0
    // Predicated region
    $region2: #{mha_forward.9} parent=1 // pred_check
      _
    $region3: #{mha_forward.9} parent=1 // pred_check_branch
      %12 = sbr.rel (0) target = $region5
    $region4: #{mha_forward.9} parent=1 // pred_region
      %s14 = ssub.s32 16, 16
      %15 = vsyncadd [#allocation4], %s14
      %s17 = sshll.u32 %s0, 4
      %s18 = int_to_ptr.vmem [resolvable:$true] %s17
      %20 = dma.vmem_to_smem %s18, 16, [#allocation2], [#allocation4]
    $region5: #{mha_forward.9} parent=1 // pred_fallthru
      _
    // Predicated region
    $region6: #{mha_forward.9} parent=1 // pred_check
      _
    $region7: #{mha_forward.9} parent=1 // pred_check_branch
      %22 = sbr.rel (0) target = $region9
    $region8: #{mha_forward.9} parent=1 // pred_region
      _
    $region9: #{mha_forward.9} parent=1 // pred_fallthru
      _
    // Predicated region
    $region10: #{mha_forward.9} parent=1 // pred_check
      _
    $region11: #{mha_forward.9} parent=1 // pred_check_branch
      %24 = sbr.rel (0) target = $region13
    $region12: #{mha_forward.9} parent=1 // pred_region
      _
    $region13: #{mha_forward.9} parent=1 // pred_fallthru
      _
    // Predicated region
    $region14: #{mha_forward.9} parent=1 // pred_check
      _
    $region15: #{mha_forward.9} parent=1 // pred_check_branch
      %26 = sbr.rel (0) target = $region17
    $region16: #{mha_forward.9} parent=1 // pred_region
      _
    $region17: #{mha_forward.9} parent=1 // pred_fallthru
      _
    // Predicated region
    $region18: #{mha_forward.9} parent=1 // pred_check
      _
    $region19: #{mha_forward.9} parent=1 // pred_check_branch
      %28 = sbr.rel (0) target = $region21
    $region20: #{mha_forward.9} parent=1 // pred_region
      %29 = dma.done [#allocation4], 16
    $region21: #{mha_forward.9} parent=1 // pred_fallthru
      _
    %30 = sfence
    %s32 = sld [smem:[#allocation2]]
    %s33 = sld [smem:[#allocation2 + $0x1]]
    %s34 = sld [smem:[#allocation2 + $0x2]]
    %s35 = sld [smem:[#allocation2 + $0x3]]
    %v36 = vld [vmem:[%s1] sm:$0xff]
    %v37 = vld [vmem:[%s1 + $0x8] sm:$0xff]
    %v38 = vstv %s35
    %v39 = vmul.f32 %v36, %v38
    %v40 = vmul.f32 %v37, %v38
    %v41 = vround.ne.pseudo %v39
    %v42 = vround.ne.pseudo %v40
    %v43 = vstv %s33
    %v44 = vmax.f32 %v43, %v41
    %v45 = vmax.f32 %v43, %v42
    %v46 = vstv %s34
    %v47 = vmin.f32 %v46, %v44
    %v48 = vmin.f32 %v46, %v45
    %v49 = vstv %s32
    %v50 = vmul.f32 %v47, %v49
    %v51 = vmul.f32 %v48, %v49
    %v52 = vpack.c.bf16 %v51, %v50
    %v53 = vld [vmem:[%s2] sm:$0xf]
    %v54 = vld [vmem:[%s2 + $0x4] sm:$0xf]
    %v55 = vld [vmem:[%s2 + $0x8] sm:$0xf]
    %v56 = vld [vmem:[%s2 + $0xc] sm:$0xf]
    %v57 = vld [vmem:[%s3] sm:$0x1]
    %v59 = vlaneseq
    %v60 = vshrl.u32 %v59, 7
    %v61 = vsub.s32 0, %v60
    %v62 = vrot.slane %v57, %v61
    %v68 = vunpack.c.l.b16 %v53
    %v69 = vunpack.c.l.b16 %v54
    %v70 = vunpack.c.l.b16 %v55
    %v71 = vunpack.c.l.b16 %v56
    %v72 = vpack.c.b16 %v69, %v68
    %v73 = vpack.c.b16 %v71, %v70
    %vm76 = vcmask 261120
    %v78 = vsel %vm76, %v52, 0
    %80 = vmatprep.subr.bf16.mxu0 0
    %81 = vmatpush1.bf16.msra.mxu0 0
    %82 = vmatprep.subr.bf16.mxu0 0
    %83 = vmatpush1.bf16.msra.mxu0 0
    %84 = vmatprep.subr.bf16.mxu0 0
    %85 = vmatpush1.bf16.msra.mxu0 0
    %86 = vmatprep.subr.bf16.mxu0 0
    %87 = vmatpush1.bf16.msra.mxu0 0
    %88 = vmatprep.subr.bf16.mxu0 0
    %89 = vmatpush1.bf16.msra.mxu0 0
    %90 = vmatprep.subr.bf16.mxu0 0
    %91 = vmatpush1.bf16.msra.mxu0 0
    %92 = vmatprep.subr.bf16.mxu0 0
    %93 = vmatpush1.bf16.msra.mxu0 %v73
    %94 = vmatprep.subr.bf16.mxu0 0
    %95 = vmatpush1.bf16.msra.mxu0 %v72
    %96 = vmatprep.subr.bf16.mxu0 0
    %97 = vmatpush2.bf16.msra.mxu0 0
    %98 = vmatprep.subr.bf16.mxu0 0
    %99 = vmatpush2.bf16.msra.mxu0 0
    %100 = vmatprep.subr.bf16.mxu0 0
    %101 = vmatpush2.bf16.msra.mxu0 0
    %102 = vmatprep.subr.bf16.mxu0 0
    %103 = vmatpush2.bf16.msra.mxu0 0
    %104 = vmatprep.subr.bf16.mxu0 0
    %105 = vmatpush2.bf16.msra.mxu0 0
    %106 = vmatprep.subr.bf16.mxu0 0
    %107 = vmatpush2.bf16.msra.mxu0 0
    %108 = vmatprep.subr.bf16.mxu0 0
    %109 = vmatpush2.bf16.msra.mxu0 0
    %110 = vmatprep.subr.bf16.mxu0 0
    %111 = vmatpush2.bf16.msra.mxu0 0
    %112 = vmatprep.mubr.bf16.mxu0 0
    %113 = vmatmul.mubr.bf16.gmra.mxu0 %v78
    %v114 = vpop.f32.mrf.mxu0
    %v115 = vadd.f32 %v62, %v114
    %v116 = vpop.f32.mrf.mxu0
    %v117 = vpop.f32.mrf.mxu0
    %v118 = vadd.f32 %v62, %v117
    %v119 = vpop.f32.mrf.mxu0
    %120 = vdwg.mxu0
    %121 = vst.msk [vmem:[#allocation5] sm:$0xff] %vm76, %v115
    %122 = vst.msk [vmem:[#allocation5 + $0x8] sm:$0xff] %vm76, %v118
    // Predicated region
    $region22: #{mha_forward.9} parent=1 // pred_check
      _
    $region23: #{mha_forward.9} parent=1 // pred_check_branch
      %124 = sbr.rel (0) target = $region25
    $region24: #{mha_forward.9} parent=1 // pred_region
      %s126 = ssub.s32 256, 256
      %127 = vsyncadd [#allocation3], %s126
      %s128 = sshll.u32 [#allocation5], 4
      %s129 = int_to_ptr.vmem [resolvable:$true] %s128
      %134 = dma.vmem_to_hbm [thread:$0]  %s129, 256, %s4, [#allocation3], 128, 128, 8
    $region25: #{mha_forward.9} parent=1 // pred_fallthru
      _
    // Predicated region
    $region26: #{mha_forward.9} parent=1 // pred_check
      _
    $region27: #{mha_forward.9} parent=1 // pred_check_branch
      %136 = sbr.rel (0) target = $region29
    $region28: #{mha_forward.9} parent=1 // pred_region
      %137 = dma.done [#allocation3], 256
    $region29: #{mha_forward.9} parent=1 // pred_fallthru
      _
    %138 = vsyncpa [#allocation3], 1
    %139 = vsyncpa [#allocation4], 1

// kernel: mha_forward.8
$region0: #{mha_forward.8}
  #allocation0 [shape = 'u32[]', space=smem, size = 0x4, offset = 0x4, fixed_abs, tag = 'smem constant byte address 0x4 - core index']
  #allocation1 [shape = 'u32[144,128]{1,0:T(1,128)}', space=vmem, size = 0x12000, scoped, tag = 'internal scratch']
  %s0 = inlined_call_operand.vmem [shape: f32[2,8,32], index: 0, kind: input, shape index: {}]
  %s1 = inlined_call_operand.vmem [shape: f32[2,8,32], index: 1, kind: input, shape index: {}]
  %s2 = inlined_call_operand.vmem [shape: f32[2,8,32], index: 2, kind: input, shape index: {}]
  %s3 = inlined_call_operand.vmem [shape: f32[2,8,32], index: 3, kind: output, shape index: {}]
  %s4 = sld [smem:[#allocation0]]
  $region45: #{mha_forward.8} parent=0
    _
  %s6 = ssub.s32 1, %s4
  %s7 = scalar_select 0, %s6, %s4
  loop: start=0, step=1, limit=4
  $region2: #{mha_forward.8} parent=0 // loop_pre_header
    _
  $region3: #{mha_forward.8} parent=0 // loop_header
    %s9 = sphi 0, %s13
    %p10 = scmp.ge.s32.totalorder %s9, 4
    %s19 = sphi 0, %s21
    %s22 = sphi 0, %s19
    %s23 = sphi 0, %s22
    %s39 = sphi 0, %s23
    %s45 = sphi 0, %s47
    %s48 = sphi 0, %s45
    %s49 = sphi 0, %s48
    %s65 = sphi 0, %s49
    %s71 = sphi 0, %s73
    %s74 = sphi 0, %s71
    %s75 = sphi 0, %s74
    %s91 = sphi 0, %s75
    %s97 = sphi 0, %s99
    %s100 = sphi 0, %s97
    %s101 = sphi 0, %s100
    %s117 = sphi 0, %s101
  $region4: #{mha_forward.8} parent=0 // loop_header_branch
    %12 = sbr.rel (%p10) target = $region8
  $region5: #{mha_forward.8} parent=0 // loop_body
    %s14 = ssub.s32 %s9, 1
    %s15 = ssub.s32 %s9, 2
    %s16 = sadd.s32 %s9, 1
    %s17 = ssub.s32 %s9, %s16
    %p18 = scmp.eq.s32.totalorder %s17, 0
    %s20 = sadd.s32 %s19, 1
    %s21 = scalar_select %p18, %s19, %s20
    %p24 = pneg %p18
    %p25 = scmp.eq.s32.totalorder %s9, 1
    %p26 = por %p24, %p25
    %p27 = scmp.ne.s32.totalorder %s19, %s22
    %p28 = scmp.eq.s32.totalorder %s9, 0
    %p29 = por %p27, %p28
    %p30 = scmp.ne.s32.totalorder %s19, %s22
    %p31 = scmp.eq.s32.totalorder %s14, 1
    %p32 = por %p30, %p31
    %p33 = scmp.ne.s32.totalorder %s22, %s23
    %p34 = scmp.eq.s32.totalorder %s14, 0
    %p35 = por %p33, %p34
    %p36 = scmp.ne.s32.totalorder %s22, %s23
    %p37 = scmp.eq.s32.totalorder %s15, 1
    %p38 = por %p36, %p37
    %p40 = scmp.ne.s32.totalorder %s23, %s39
    %p41 = scmp.eq.s32.totalorder %s15, 0
    %p42 = por %p40, %p41
    %s43 = ssub.s32 %s9, %s16
    %p44 = scmp.eq.s32.totalorder %s43, 0
    %s46 = sadd.s32 %s45, 1
    %s47 = scalar_select %p44, %s45, %s46
    %p50 = pneg %p44
    %p51 = scmp.eq.s32.totalorder %s9, 1
    %p52 = por %p50, %p51
    %p53 = scmp.ne.s32.totalorder %s45, %s48
    %p54 = scmp.eq.s32.totalorder %s9, 0
    %p55 = por %p53, %p54
    %p56 = scmp.ne.s32.totalorder %s45, %s48
    %p57 = scmp.eq.s32.totalorder %s14, 1
    %p58 = por %p56, %p57
    %p59 = scmp.ne.s32.totalorder %s48, %s49
    %p60 = scmp.eq.s32.totalorder %s14, 0
    %p61 = por %p59, %p60
    %p62 = scmp.ne.s32.totalorder %s48, %s49
    %p63 = scmp.eq.s32.totalorder %s15, 1
    %p64 = por %p62, %p63
    %p66 = scmp.ne.s32.totalorder %s49, %s65
    %p67 = scmp.eq.s32.totalorder %s15, 0
    %p68 = por %p66, %p67
    %s69 = ssub.s32 %s9, %s16
    %p70 = scmp.eq.s32.totalorder %s69, 0
    %s72 = sadd.s32 %s71, 1
    %s73 = scalar_select %p70, %s71, %s72
    %p76 = pneg %p70
    %p77 = scmp.eq.s32.totalorder %s9, 1
    %p78 = por %p76, %p77
    %p79 = scmp.ne.s32.totalorder %s71, %s74
    %p80 = scmp.eq.s32.totalorder %s9, 0
    %p81 = por %p79, %p80
    %p82 = scmp.ne.s32.totalorder %s71, %s74
    %p83 = scmp.eq.s32.totalorder %s14, 1
    %p84 = por %p82, %p83
    %p85 = scmp.ne.s32.totalorder %s74, %s75
    %p86 = scmp.eq.s32.totalorder %s14, 0
    %p87 = por %p85, %p86
    %p88 = scmp.ne.s32.totalorder %s74, %s75
    %p89 = scmp.eq.s32.totalorder %s15, 1
    %p90 = por %p88, %p89
    %p92 = scmp.ne.s32.totalorder %s75, %s91
    %p93 = scmp.eq.s32.totalorder %s15, 0
    %p94 = por %p92, %p93
    %s95 = ssub.s32 %s9, %s16
    %p96 = scmp.eq.s32.totalorder %s95, 0
    %s98 = sadd.s32 %s97, 1
    %s99 = scalar_select %p96, %s97, %s98
    %p102 = pneg %p96
    %p103 = scmp.eq.s32.totalorder %s9, 1
    %p104 = por %p102, %p103
    %p105 = scmp.ne.s32.totalorder %s97, %s100
    %p106 = scmp.eq.s32.totalorder %s9, 0
    %p107 = por %p105, %p106
    %p108 = scmp.ne.s32.totalorder %s97, %s100
    %p109 = scmp.eq.s32.totalorder %s14, 1
    %p110 = por %p108, %p109
    %p111 = scmp.ne.s32.totalorder %s100, %s101
    %p112 = scmp.eq.s32.totalorder %s14, 0
    %p113 = por %p111, %p112
    %p114 = scmp.ne.s32.totalorder %s100, %s101
    %p115 = scmp.eq.s32.totalorder %s15, 1
    %p116 = por %p114, %p115
    %p118 = scmp.ne.s32.totalorder %s101, %s117
    %p119 = scmp.eq.s32.totalorder %s15, 0
    %p120 = por %p118, %p119
    %p121 = scmp.le.s32.totalorder 1, %s9
    %p122 = scmp.lt.s32.totalorder %s9, 3
    %p123 = pnand %p121, %p122
    %p124 = pneg %p123
    // Predicated region
    $region9: #{mha_forward.8} parent=5 // pred_check
      _
    $region10: #{mha_forward.8} parent=5 // pred_check_branch
      %126 = sbr.rel (%p123) target = $region12
    $region11: #{mha_forward.8} parent=5 // pred_region
      %s127 = ssub.s32 %s9, 1
    $region12: #{mha_forward.8} parent=5 // pred_fallthru
      _
    %p128 = scmp.lt.s32.totalorder %s9, 2
    // Predicated region
    $region13: #{mha_forward.8} parent=5 // pred_check
      %p129 = pneg %p128
    $region14: #{mha_forward.8} parent=5 // pred_check_branch
      %131 = sbr.rel (%p129) target = $region16
    $region15: #{mha_forward.8} parent=5 // pred_region
      // Predicated region
      $region17: #{mha_forward.8} parent=15 // pred_check
        %p132 = pneg %p29
      $region18: #{mha_forward.8} parent=15 // pred_check_branch
        %134 = sbr.rel (%p132) target = $region20
      $region19: #{mha_forward.8} parent=15 // pred_region
        %p135 = scmp.lt.s32.totalorder %s9, 1
        %s136 = scalar_select %p135, %s9, 1
        %s137 = smul.addr %s136, 8
        %s138 = scalar_lea.vmem %s0, %s137
      $region20: #{mha_forward.8} parent=15 // pred_fallthru
        _
      // Predicated region
      $region21: #{mha_forward.8} parent=15 // pred_check
        %p139 = pneg %p55
      $region22: #{mha_forward.8} parent=15 // pred_check_branch
        %141 = sbr.rel (%p139) target = $region24
      $region23: #{mha_forward.8} parent=15 // pred_region
        %p142 = scmp.lt.s32.totalorder %s9, 1
        %s143 = scalar_select %p142, %s9, 1
        %s144 = smul.addr %s143, 8
        %s145 = scalar_lea.vmem %s1, %s144
      $region24: #{mha_forward.8} parent=15 // pred_fallthru
        _
      // Predicated region
      $region25: #{mha_forward.8} parent=15 // pred_check
        %p146 = pneg %p81
      $region26: #{mha_forward.8} parent=15 // pred_check_branch
        %148 = sbr.rel (%p146) target = $region28
      $region27: #{mha_forward.8} parent=15 // pred_region
        %p149 = scmp.lt.s32.totalorder %s9, 1
        %s150 = scalar_select %p149, %s9, 1
        %s151 = smul.addr %s150, 8
        %s152 = scalar_lea.vmem %s2, %s151
      $region28: #{mha_forward.8} parent=15 // pred_fallthru
        _
    $region16: #{mha_forward.8} parent=5 // pred_fallthru
      _
    %p153 = scmp.le.s32.totalorder 1, %s9
    %p154 = scmp.lt.s32.totalorder %s9, 3
    %p155 = pnand %p153, %p154
    %p156 = pneg %p155
    // Predicated region
    $region29: #{mha_forward.8} parent=5 // pred_check
      _
    $region30: #{mha_forward.8} parent=5 // pred_check_branch
      %158 = sbr.rel (%p155) target = $region32
    $region31: #{mha_forward.8} parent=5 // pred_region
      %s159 = ssub.s32 %s9, 1
      %p160 = scmp.lt.s32.totalorder %s14, 1
      %s161 = scalar_select %p160, %s14, 1
      %s162 = smul.addr %s161, 8
      %s163 = scalar_lea.vmem %s0, %s162
      %p164 = pneg %p35
      %p165 = pneg %p32
      %p166 = scmp.lt.s32.totalorder %s14, 1
      %s167 = scalar_select %p166, %s14, 1
      %s168 = smul.addr %s167, 8
      %s169 = scalar_lea.vmem %s1, %s168
      %p170 = pneg %p61
      %p171 = pneg %p58
      %p172 = scmp.lt.s32.totalorder %s14, 1
      %s173 = scalar_select %p172, %s14, 1
      %s174 = smul.addr %s173, 8
      %s175 = scalar_lea.vmem %s2, %s174
      %p176 = pneg %p87
      %p177 = pneg %p84
      %p178 = pneg %p113
      %p179 = pneg %p110
      %p180 = scmp.lt.s32.totalorder %s14, 1
      %s181 = scalar_select %p180, %s14, 1
      %s182 = smul.addr %s181, 8
      %s183 = scalar_lea.vmem %s3, %s182
      %p184 = scmp.lt.s32.totalorder %s14, 1
      %s185 = scalar_select %p184, %s14, 1
      %s186 = smul.addr %s185, 8
      %s187 = scalar_lea.vmem %s0, %s186
      %p188 = scmp.lt.s32.totalorder %s14, 1
      %s189 = scalar_select %p188, %s14, 1
      %s190 = smul.addr %s189, 8
      %s191 = scalar_lea.vmem %s1, %s190
      %p192 = scmp.lt.s32.totalorder %s14, 1
      %s193 = scalar_select %p192, %s14, 1
      %s194 = smul.addr %s193, 8
      %s195 = scalar_lea.vmem %s2, %s194
      %p196 = scmp.lt.s32.totalorder %s14, 1
      %s197 = scalar_select %p196, %s14, 1
      %s198 = smul.addr %s197, 8
      %s199 = scalar_lea.vmem %s3, %s198
      %v201 = vld [vmem:[%s187] sm:$0xff]
      %v202 = vld [vmem:[%s191] sm:$0xff]
      %v203 = vld [vmem:[%s195] sm:$0xff]
      %v204 = vpack.c.bf16 %v201, %v201
      %v205 = vpack.c.bf16 %v202, %v202
      %v206 = vpack.c.bf16 %v203, %v203
      %vm207 = vcmask 64512
      %v209 = vsel %vm207, %v204, 0
      %v212 = vsel %vm207, %v205, 0
      %214 = vmatprep.subr.bf16.mxu0 0
      %215 = vmatpush1.bf16.xpose.msra.mxu0 0
      %216 = vmatprep.subr.bf16.mxu0 0
      %217 = vmatpush1.bf16.xpose.msra.mxu0 0
      %218 = vmatprep.subr.bf16.mxu0 0
      %219 = vmatpush1.bf16.xpose.msra.mxu0 0
      %220 = vmatprep.subr.bf16.mxu0 0
      %221 = vmatpush1.bf16.xpose.msra.mxu0 0
      %222 = vmatprep.subr.bf16.mxu0 0
      %223 = vmatpush1.bf16.xpose.msra.mxu0 0
      %224 = vmatprep.subr.bf16.mxu0 0
      %225 = vmatpush1.bf16.xpose.msra.mxu0 0
      %226 = vmatprep.subr.bf16.mxu0 0
      %227 = vmatpush1.bf16.xpose.msra.mxu0 0
      %228 = vmatprep.subr.bf16.mxu0 0
      %229 = vmatpush1.bf16.xpose.msra.mxu0 %v212
      %230 = vmatprep.subr.bf16.mxu0 0
      %231 = vmatpush2.bf16.xpose.msra.mxu0 0
      %232 = vmatprep.subr.bf16.mxu0 0
      %233 = vmatpush2.bf16.xpose.msra.mxu0 0
      %234 = vmatprep.subr.bf16.mxu0 0
      %235 = vmatpush2.bf16.xpose.msra.mxu0 0
      %236 = vmatprep.subr.bf16.mxu0 0
      %237 = vmatpush2.bf16.xpose.msra.mxu0 0
      %238 = vmatprep.subr.bf16.mxu0 0
      %239 = vmatpush2.bf16.xpose.msra.mxu0 0
      %240 = vmatprep.subr.bf16.mxu0 0
      %241 = vmatpush2.bf16.xpose.msra.mxu0 0
      %242 = vmatprep.subr.bf16.mxu0 0
      %243 = vmatpush2.bf16.xpose.msra.mxu0 0
      %244 = vmatprep.subr.bf16.mxu0 0
      %245 = vmatpush2.bf16.xpose.msra.mxu0 0
      %246 = vmatprep.mubr.bf16.mxu0 0
      %247 = vmatmul.mubr.bf16.gmra.mxu0 %v209
      %v248 = vpop.f32.mrf.mxu0
      %v249 = vadd.f32 0.0, %v248
      %v250 = vpop.f32.mrf.mxu0
      %v251 = vpop.f32.mrf.mxu0
      %v252 = vpop.f32.mrf.mxu0
      %253 = vdwg.mxu0
      %v254 = vmul.f32 %v249, 0.35355338
      %v255 = vsel %vm207, %v254, -inf
      %256 = vmax.xlane.f32.xlu0 %v255
      %v257 = vpop.xlane.xlu0 %256
      %v258 = vsub.f32 %v254, %v257
      %v259 = vmul.f32 %v258, 1.442695
      %v260 = vpow.pop %v259
      %v261 = vsel %vm207, %v260, 0.0
      %262 = vadd.xlane.f32.xlu0 %v261
      %v263 = vpop.xlane.xlu0 %262
      %v264 = vrcp.pop %v263
      %v265 = vmul.f32 %v260, %v264
      %v266 = vpack.c.bf16 %v265, %v265
      %v268 = vsel %vm207, %v266, 0
      %vm270 = vcmask 1043456
      %v272 = vsel %vm270, %v206, 0
      %274 = vmatprep.subr.bf16.mxu0 0
      %275 = vmatpush1.bf16.msra.mxu0 0
      %276 = vmatprep.subr.bf16.mxu0 0
      %277 = vmatpush1.bf16.msra.mxu0 0
      %278 = vmatprep.subr.bf16.mxu0 0
      %279 = vmatpush1.bf16.msra.mxu0 0
      %280 = vmatprep.subr.bf16.mxu0 0
      %281 = vmatpush1.bf16.msra.mxu0 0
      %282 = vmatprep.subr.bf16.mxu0 0
      %283 = vmatpush1.bf16.msra.mxu0 0
      %284 = vmatprep.subr.bf16.mxu0 0
      %285 = vmatpush1.bf16.msra.mxu0 0
      %286 = vmatprep.subr.bf16.mxu0 0
      %287 = vmatpush1.bf16.msra.mxu0 0
      %288 = vmatprep.subr.bf16.mxu0 0
      %289 = vmatpush1.bf16.msra.mxu0 %v272
      %290 = vmatprep.subr.bf16.mxu0 0
      %291 = vmatpush2.bf16.msra.mxu0 0
      %292 = vmatprep.subr.bf16.mxu0 0
      %293 = vmatpush2.bf16.msra.mxu0 0
      %294 = vmatprep.subr.bf16.mxu0 0
      %295 = vmatpush2.bf16.msra.mxu0 0
      %296 = vmatprep.subr.bf16.mxu0 0
      %297 = vmatpush2.bf16.msra.mxu0 0
      %298 = vmatprep.subr.bf16.mxu0 0
      %299 = vmatpush2.bf16.msra.mxu0 0
      %300 = vmatprep.subr.bf16.mxu0 0
      %301 = vmatpush2.bf16.msra.mxu0 0
      %302 = vmatprep.subr.bf16.mxu0 0
      %303 = vmatpush2.bf16.msra.mxu0 0
      %304 = vmatprep.subr.bf16.mxu0 0
      %305 = vmatpush2.bf16.msra.mxu0 0
      %306 = vmatprep.mubr.bf16.mxu0 0
      %307 = vmatmul.mubr.bf16.gmra.mxu0 %v268
      %v308 = vpop.f32.mrf.mxu0
      %v309 = vadd.f32 0.0, %v308
      %v310 = vpop.f32.mrf.mxu0
      %v311 = vpop.f32.mrf.mxu0
      %v312 = vpop.f32.mrf.mxu0
      %313 = vdwg.mxu0
      %314 = vst.msk [vmem:[%s199] sm:$0xff] %vm207, %v309
      %316 = vrot.lane.b32.xlu0 %v204, 120
      %v317 = vpop.permute.xlu0 %316
      %319 = vrot.lane.b32.xlu0 %v205, 120
      %v320 = vpop.permute.xlu0 %319
      %v322 = vsel %vm207, %v317, 0
      %v325 = vsel %vm207, %v320, 0
      %327 = vmatprep.subr.bf16.mxu0 0
      %328 = vmatpush1.bf16.xpose.msra.mxu0 0
      %329 = vmatprep.subr.bf16.mxu0 0
      %330 = vmatpush1.bf16.xpose.msra.mxu0 0
      %331 = vmatprep.subr.bf16.mxu0 0
      %332 = vmatpush1.bf16.xpose.msra.mxu0 0
      %333 = vmatprep.subr.bf16.mxu0 0
      %334 = vmatpush1.bf16.xpose.msra.mxu0 0
      %335 = vmatprep.subr.bf16.mxu0 0
      %336 = vmatpush1.bf16.xpose.msra.mxu0 0
      %337 = vmatprep.subr.bf16.mxu0 0
      %338 = vmatpush1.bf16.xpose.msra.mxu0 0
      %339 = vmatprep.subr.bf16.mxu0 0
      %340 = vmatpush1.bf16.xpose.msra.mxu0 0
      %341 = vmatprep.subr.bf16.mxu0 0
      %342 = vmatpush1.bf16.xpose.msra.mxu0 %v325
      %343 = vmatprep.subr.bf16.mxu0 0
      %344 = vmatpush2.bf16.xpose.msra.mxu0 0
      %345 = vmatprep.subr.bf16.mxu0 0
      %346 = vmatpush2.bf16.xpose.msra.mxu0 0
      %347 = vmatprep.subr.bf16.mxu0 0
      %348 = vmatpush2.bf16.xpose.msra.mxu0 0
      %349 = vmatprep.subr.bf16.mxu0 0
      %350 = vmatpush2.bf16.xpose.msra.mxu0 0
      %351 = vmatprep.subr.bf16.mxu0 0
      %352 = vmatpush2.bf16.xpose.msra.mxu0 0
      %353 = vmatprep.subr.bf16.mxu0 0
      %354 = vmatpush2.bf16.xpose.msra.mxu0 0
      %355 = vmatprep.subr.bf16.mxu0 0
      %356 = vmatpush2.bf16.xpose.msra.mxu0 0
      %357 = vmatprep.subr.bf16.mxu0 0
      %358 = vmatpush2.bf16.xpose.msra.mxu0 0
      %359 = vmatprep.mubr.bf16.mxu0 0
      %360 = vmatmul.mubr.bf16.gmra.mxu0 %v322
      %v361 = vpop.f32.mrf.mxu0
      %v362 = vadd.f32 0.0, %v361
      %v363 = vpop.f32.mrf.mxu0
      %v364 = vpop.f32.mrf.mxu0
      %v365 = vpop.f32.mrf.mxu0
      %366 = vdwg.mxu0
      %v367 = vmul.f32 %v362, 0.35355338
      %v368 = vsel %vm207, %v367, -inf
      %369 = vmax.xlane.f32.xlu0 %v368
      %v370 = vpop.xlane.xlu0 %369
      %v371 = vsub.f32 %v367, %v370
      %v372 = vmul.f32 %v371, 1.442695
      %v373 = vpow.pop %v372
      %v374 = vsel %vm207, %v373, 0.0
      %375 = vadd.xlane.f32.xlu0 %v374
      %v376 = vpop.xlane.xlu0 %375
      %v377 = vrcp.pop %v376
      %v378 = vmul.f32 %v373, %v377
      %v379 = vpack.c.bf16 %v378, %v378
      %381 = vrot.lane.b32.xlu0 %v206, 120
      %v382 = vpop.permute.xlu0 %381
      %v384 = vsel %vm207, %v379, 0
      %v387 = vsel %vm270, %v382, 0
      %389 = vmatprep.subr.bf16.mxu0 0
      %390 = vmatpush1.bf16.msra.mxu0 0
      %391 = vmatprep.subr.bf16.mxu0 0
      %392 = vmatpush1.bf16.msra.mxu0 0
      %393 = vmatprep.subr.bf16.mxu0 0
      %394 = vmatpush1.bf16.msra.mxu0 0
      %395 = vmatprep.subr.bf16.mxu0 0
      %396 = vmatpush1.bf16.msra.mxu0 0
      %397 = vmatprep.subr.bf16.mxu0 0
      %398 = vmatpush1.bf16.msra.mxu0 0
      %399 = vmatprep.subr.bf16.mxu0 0
      %400 = vmatpush1.bf16.msra.mxu0 0
      %401 = vmatprep.subr.bf16.mxu0 0
      %402 = vmatpush1.bf16.msra.mxu0 0
      %403 = vmatprep.subr.bf16.mxu0 0
      %404 = vmatpush1.bf16.msra.mxu0 %v387
      %405 = vmatprep.subr.bf16.mxu0 0
      %406 = vmatpush2.bf16.msra.mxu0 0
      %407 = vmatprep.subr.bf16.mxu0 0
      %408 = vmatpush2.bf16.msra.mxu0 0
      %409 = vmatprep.subr.bf16.mxu0 0
      %410 = vmatpush2.bf16.msra.mxu0 0
      %411 = vmatprep.subr.bf16.mxu0 0
      %412 = vmatpush2.bf16.msra.mxu0 0
      %413 = vmatprep.subr.bf16.mxu0 0
      %414 = vmatpush2.bf16.msra.mxu0 0
      %415 = vmatprep.subr.bf16.mxu0 0
      %416 = vmatpush2.bf16.msra.mxu0 0
      %417 = vmatprep.subr.bf16.mxu0 0
      %418 = vmatpush2.bf16.msra.mxu0 0
      %419 = vmatprep.subr.bf16.mxu0 0
      %420 = vmatpush2.bf16.msra.mxu0 0
      %421 = vmatprep.mubr.bf16.mxu0 0
      %422 = vmatmul.mubr.bf16.gmra.mxu0 %v384
      %v423 = vpop.f32.mrf.mxu0
      %v424 = vadd.f32 0.0, %v423
      %v425 = vpop.f32.mrf.mxu0
      %v426 = vpop.f32.mrf.mxu0
      %v427 = vpop.f32.mrf.mxu0
      %428 = vdwg.mxu0
      %430 = vrot.lane.b32.xlu0 %v424, 8
      %v431 = vpop.permute.xlu0 %430
      %vm433 = vcmask 130112
      %434 = vst.msk [vmem:[%s199] sm:$0xff] %vm433, %v431
      %435 = vrot.lane.b32.xlu0 %v204, 112
      %v436 = vpop.permute.xlu0 %435
      %437 = vrot.lane.b32.xlu0 %v205, 112
      %v438 = vpop.permute.xlu0 %437
      %v440 = vsel %vm207, %v436, 0
      %v443 = vsel %vm207, %v438, 0
      %445 = vmatprep.subr.bf16.mxu0 0
      %446 = vmatpush1.bf16.xpose.msra.mxu0 0
      %447 = vmatprep.subr.bf16.mxu0 0
      %448 = vmatpush1.bf16.xpose.msra.mxu0 0
      %449 = vmatprep.subr.bf16.mxu0 0
      %450 = vmatpush1.bf16.xpose.msra.mxu0 0
      %451 = vmatprep.subr.bf16.mxu0 0
      %452 = vmatpush1.bf16.xpose.msra.mxu0 0
      %453 = vmatprep.subr.bf16.mxu0 0
      %454 = vmatpush1.bf16.xpose.msra.mxu0 0
      %455 = vmatprep.subr.bf16.mxu0 0
      %456 = vmatpush1.bf16.xpose.msra.mxu0 0
      %457 = vmatprep.subr.bf16.mxu0 0
      %458 = vmatpush1.bf16.xpose.msra.mxu0 0
      %459 = vmatprep.subr.bf16.mxu0 0
      %460 = vmatpush1.bf16.xpose.msra.mxu0 %v443
      %461 = vmatprep.subr.bf16.mxu0 0
      %462 = vmatpush2.bf16.xpose.msra.mxu0 0
      %463 = vmatprep.subr.bf16.mxu0 0
      %464 = vmatpush2.bf16.xpose.msra.mxu0 0
      %465 = vmatprep.subr.bf16.mxu0 0
      %466 = vmatpush2.bf16.xpose.msra.mxu0 0
      %467 = vmatprep.subr.bf16.mxu0 0
      %468 = vmatpush2.bf16.xpose.msra.mxu0 0
      %469 = vmatprep.subr.bf16.mxu0 0
      %470 = vmatpush2.bf16.xpose.msra.mxu0 0
      %471 = vmatprep.subr.bf16.mxu0 0
      %472 = vmatpush2.bf16.xpose.msra.mxu0 0
      %473 = vmatprep.subr.bf16.mxu0 0
      %474 = vmatpush2.bf16.xpose.msra.mxu0 0
      %475 = vmatprep.subr.bf16.mxu0 0
      %476 = vmatpush2.bf16.xpose.msra.mxu0 0
      %477 = vmatprep.mubr.bf16.mxu0 0
      %478 = vmatmul.mubr.bf16.gmra.mxu0 %v440
      %v479 = vpop.f32.mrf.mxu0
      %v480 = vadd.f32 0.0, %v479
      %v481 = vpop.f32.mrf.mxu0
      %v482 = vpop.f32.mrf.mxu0
      %v483 = vpop.f32.mrf.mxu0
      %484 = vdwg.mxu0
      %v485 = vmul.f32 %v480, 0.35355338
      %v486 = vsel %vm207, %v485, -inf
      %487 = vmax.xlane.f32.xlu0 %v486
      %v488 = vpop.xlane.xlu0 %487
      %v489 = vsub.f32 %v485, %v488
      %v490 = vmul.f32 %v489, 1.442695
      %v491 = vpow.pop %v490
      %v492 = vsel %vm207, %v491, 0.0
      %493 = vadd.xlane.f32.xlu0 %v492
      %v494 = vpop.xlane.xlu0 %493
      %v495 = vrcp.pop %v494
      %v496 = vmul.f32 %v491, %v495
      %v497 = vpack.c.bf16 %v496, %v496
      %498 = vrot.lane.b32.xlu0 %v206, 112
      %v499 = vpop.permute.xlu0 %498
      %v501 = vsel %vm207, %v497, 0
      %v504 = vsel %vm270, %v499, 0
      %506 = vmatprep.subr.bf16.mxu0 0
      %507 = vmatpush1.bf16.msra.mxu0 0
      %508 = vmatprep.subr.bf16.mxu0 0
      %509 = vmatpush1.bf16.msra.mxu0 0
      %510 = vmatprep.subr.bf16.mxu0 0
      %511 = vmatpush1.bf16.msra.mxu0 0
      %512 = vmatprep.subr.bf16.mxu0 0
      %513 = vmatpush1.bf16.msra.mxu0 0
      %514 = vmatprep.subr.bf16.mxu0 0
      %515 = vmatpush1.bf16.msra.mxu0 0
      %516 = vmatprep.subr.bf16.mxu0 0
      %517 = vmatpush1.bf16.msra.mxu0 0
      %518 = vmatprep.subr.bf16.mxu0 0
      %519 = vmatpush1.bf16.msra.mxu0 0
      %520 = vmatprep.subr.bf16.mxu0 0
      %521 = vmatpush1.bf16.msra.mxu0 %v504
      %522 = vmatprep.subr.bf16.mxu0 0
      %523 = vmatpush2.bf16.msra.mxu0 0
      %524 = vmatprep.subr.bf16.mxu0 0
      %525 = vmatpush2.bf16.msra.mxu0 0
      %526 = vmatprep.subr.bf16.mxu0 0
      %527 = vmatpush2.bf16.msra.mxu0 0
      %528 = vmatprep.subr.bf16.mxu0 0
      %529 = vmatpush2.bf16.msra.mxu0 0
      %530 = vmatprep.subr.bf16.mxu0 0
      %531 = vmatpush2.bf16.msra.mxu0 0
      %532 = vmatprep.subr.bf16.mxu0 0
      %533 = vmatpush2.bf16.msra.mxu0 0
      %534 = vmatprep.subr.bf16.mxu0 0
      %535 = vmatpush2.bf16.msra.mxu0 0
      %536 = vmatprep.subr.bf16.mxu0 0
      %537 = vmatpush2.bf16.msra.mxu0 0
      %538 = vmatprep.mubr.bf16.mxu0 0
      %539 = vmatmul.mubr.bf16.gmra.mxu0 %v501
      %v540 = vpop.f32.mrf.mxu0
      %v541 = vadd.f32 0.0, %v540
      %v542 = vpop.f32.mrf.mxu0
      %v543 = vpop.f32.mrf.mxu0
      %v544 = vpop.f32.mrf.mxu0
      %545 = vdwg.mxu0
      %547 = vrot.lane.b32.xlu0 %v541, 16
      %v548 = vpop.permute.xlu0 %547
      %vm550 = vcmask 195712
      %551 = vst.msk [vmem:[%s199] sm:$0xff] %vm550, %v548
      %552 = vrot.lane.b32.xlu0 %v204, 104
      %v553 = vpop.permute.xlu0 %552
      %554 = vrot.lane.b32.xlu0 %v205, 104
      %v555 = vpop.permute.xlu0 %554
      %v557 = vsel %vm207, %v553, 0
      %v560 = vsel %vm207, %v555, 0
      %562 = vmatprep.subr.bf16.mxu0 0
      %563 = vmatpush1.bf16.xpose.msra.mxu0 0
      %564 = vmatprep.subr.bf16.mxu0 0
      %565 = vmatpush1.bf16.xpose.msra.mxu0 0
      %566 = vmatprep.subr.bf16.mxu0 0
      %567 = vmatpush1.bf16.xpose.msra.mxu0 0
      %568 = vmatprep.subr.bf16.mxu0 0
      %569 = vmatpush1.bf16.xpose.msra.mxu0 0
      %570 = vmatprep.subr.bf16.mxu0 0
      %571 = vmatpush1.bf16.xpose.msra.mxu0 0
      %572 = vmatprep.subr.bf16.mxu0 0
      %573 = vmatpush1.bf16.xpose.msra.mxu0 0
      %574 = vmatprep.subr.bf16.mxu0 0
      %575 = vmatpush1.bf16.xpose.msra.mxu0 0
      %576 = vmatprep.subr.bf16.mxu0 0
      %577 = vmatpush1.bf16.xpose.msra.mxu0 %v560
      %578 = vmatprep.subr.bf16.mxu0 0
      %579 = vmatpush2.bf16.xpose.msra.mxu0 0
      %580 = vmatprep.subr.bf16.mxu0 0
      %581 = vmatpush2.bf16.xpose.msra.mxu0 0
      %582 = vmatprep.subr.bf16.mxu0 0
      %583 = vmatpush2.bf16.xpose.msra.mxu0 0
      %584 = vmatprep.subr.bf16.mxu0 0
      %585 = vmatpush2.bf16.xpose.msra.mxu0 0
      %586 = vmatprep.subr.bf16.mxu0 0
      %587 = vmatpush2.bf16.xpose.msra.mxu0 0
      %588 = vmatprep.subr.bf16.mxu0 0
      %589 = vmatpush2.bf16.xpose.msra.mxu0 0
      %590 = vmatprep.subr.bf16.mxu0 0
      %591 = vmatpush2.bf16.xpose.msra.mxu0 0
      %592 = vmatprep.subr.bf16.mxu0 0
      %593 = vmatpush2.bf16.xpose.msra.mxu0 0
      %594 = vmatprep.mubr.bf16.mxu0 0
      %595 = vmatmul.mubr.bf16.gmra.mxu0 %v557
      %v596 = vpop.f32.mrf.mxu0
      %v597 = vadd.f32 0.0, %v596
      %v598 = vpop.f32.mrf.mxu0
      %v599 = vpop.f32.mrf.mxu0
      %v600 = vpop.f32.mrf.mxu0
      %601 = vdwg.mxu0
      %v602 = vmul.f32 %v597, 0.35355338
      %v603 = vsel %vm207, %v602, -inf
      %604 = vmax.xlane.f32.xlu0 %v603
      %v605 = vpop.xlane.xlu0 %604
      %v606 = vsub.f32 %v602, %v605
      %v607 = vmul.f32 %v606, 1.442695
      %v608 = vpow.pop %v607
      %v609 = vsel %vm207, %v608, 0.0
      %610 = vadd.xlane.f32.xlu0 %v609
      %v611 = vpop.xlane.xlu0 %610
      %v612 = vrcp.pop %v611
      %v613 = vmul.f32 %v608, %v612
      %v614 = vpack.c.bf16 %v613, %v613
      %615 = vrot.lane.b32.xlu0 %v206, 104
      %v616 = vpop.permute.xlu0 %615
      %v618 = vsel %vm207, %v614, 0
      %v621 = vsel %vm270, %v616, 0
      %623 = vmatprep.subr.bf16.mxu0 0
      %624 = vmatpush1.bf16.msra.mxu0 0
      %625 = vmatprep.subr.bf16.mxu0 0
      %626 = vmatpush1.bf16.msra.mxu0 0
      %627 = vmatprep.subr.bf16.mxu0 0
      %628 = vmatpush1.bf16.msra.mxu0 0
      %629 = vmatprep.subr.bf16.mxu0 0
      %630 = vmatpush1.bf16.msra.mxu0 0
      %631 = vmatprep.subr.bf16.mxu0 0
      %632 = vmatpush1.bf16.msra.mxu0 0
      %633 = vmatprep.subr.bf16.mxu0 0
      %634 = vmatpush1.bf16.msra.mxu0 0
      %635 = vmatprep.subr.bf16.mxu0 0
      %636 = vmatpush1.bf16.msra.mxu0 0
      %637 = vmatprep.subr.bf16.mxu0 0
      %638 = vmatpush1.bf16.msra.mxu0 %v621
      %639 = vmatprep.subr.bf16.mxu0 0
      %640 = vmatpush2.bf16.msra.mxu0 0
      %641 = vmatprep.subr.bf16.mxu0 0
      %642 = vmatpush2.bf16.msra.mxu0 0
      %643 = vmatprep.subr.bf16.mxu0 0
      %644 = vmatpush2.bf16.msra.mxu0 0
      %645 = vmatprep.subr.bf16.mxu0 0
      %646 = vmatpush2.bf16.msra.mxu0 0
      %647 = vmatprep.subr.bf16.mxu0 0
      %648 = vmatpush2.bf16.msra.mxu0 0
      %649 = vmatprep.subr.bf16.mxu0 0
      %650 = vmatpush2.bf16.msra.mxu0 0
      %651 = vmatprep.subr.bf16.mxu0 0
      %652 = vmatpush2.bf16.msra.mxu0 0
      %653 = vmatprep.subr.bf16.mxu0 0
      %654 = vmatpush2.bf16.msra.mxu0 0
      %655 = vmatprep.mubr.bf16.mxu0 0
      %656 = vmatmul.mubr.bf16.gmra.mxu0 %v618
      %v657 = vpop.f32.mrf.mxu0
      %v658 = vadd.f32 0.0, %v657
      %v659 = vpop.f32.mrf.mxu0
      %v660 = vpop.f32.mrf.mxu0
      %v661 = vpop.f32.mrf.mxu0
      %662 = vdwg.mxu0
      %664 = vrot.lane.b32.xlu0 %v658, 24
      %v665 = vpop.permute.xlu0 %664
      %vm667 = vcmask 261312
      %668 = vst.msk [vmem:[%s199] sm:$0xff] %vm667, %v665
      %p669 = scmp.lt.s32.totalorder %s14, 1
      %s670 = scalar_select %p669, %s14, 1
      %s671 = smul.addr %s670, 8
      %s672 = scalar_lea.vmem %s3, %s671
      // Predicated region
      $region33: #{mha_forward.8} parent=31 // pred_check
        %p673 = pneg %p110
      $region34: #{mha_forward.8} parent=31 // pred_check_branch
        %675 = sbr.rel (%p673) target = $region36
      $region35: #{mha_forward.8} parent=31 // pred_region
        _
      $region36: #{mha_forward.8} parent=31 // pred_fallthru
        _
    $region32: #{mha_forward.8} parent=5 // pred_fallthru
      _
    %p676 = scmp.le.s32.totalorder 2, %s9
    // Predicated region
    $region37: #{mha_forward.8} parent=5 // pred_check
      %p677 = pneg %p676
    $region38: #{mha_forward.8} parent=5 // pred_check_branch
      %679 = sbr.rel (%p677) target = $region40
    $region39: #{mha_forward.8} parent=5 // pred_region
      %s680 = ssub.s32 %s9, 2
      // Predicated region
      $region41: #{mha_forward.8} parent=39 // pred_check
        %p681 = pneg %p116
      $region42: #{mha_forward.8} parent=39 // pred_check_branch
        %683 = sbr.rel (%p681) target = $region44
      $region43: #{mha_forward.8} parent=39 // pred_region
        %p684 = scmp.lt.s32.totalorder %s15, 1
        %s685 = scalar_select %p684, %s15, 1
        %s686 = smul.addr %s685, 8
        %s687 = scalar_lea.vmem %s3, %s686
      $region44: #{mha_forward.8} parent=39 // pred_fallthru
        _
    $region40: #{mha_forward.8} parent=5 // pred_fallthru
      _
  $region6: #{mha_forward.8} parent=0 // loop_footer
    %s13 = sadd.s32 1, %s9
  $region7: #{mha_forward.8} parent=0 // loop_footer_branch
    %8 = sbr.rel target = $region3
  $region8: #{mha_forward.8} parent=0 // loop_exit
    _

</llo_original>
